<compile_context>
chip_gen: v7x
topology: tpu7x:2x2x1
jax: 0.10.0
libtpu: 0.0.40
codegen_flags: <defaults>
</compile_context>

<pallas_src>
import jax
import jax.numpy as jnp
from jax.experimental import pallas as pl
from jax.experimental.pallas import tpu as pltpu


def colornet_kernel(xt_ref,
                    w1_ref, b1_ref,
                    w2_ref, b2_ref,
                    w3_ref, b3_ref,
                    w4_ref, b4_ref,
                    o_ref):
    # ---- layer 1: (64,4) @ (4,tb). K=4 is degenerate for the MXU, so compute it
    # as 4 outer-product FMAs on the VPU (f32); overlaps with the MXU work of the
    # following layers across the pipelined grid.
    xt = xt_ref[...]                                    # (4, tb)   f32
    w1 = w1_ref[...]                                    # (64, 4)   f32
    h = b1_ref[...] + w1[:, 0:1] * xt[0:1, :]
    h = h + w1[:, 1:2] * xt[1:2, :]
    h = h + w1[:, 2:3] * xt[2:3, :]
    h = h + w1[:, 3:4] * xt[3:4, :]
    h = jnp.maximum(h, 0.0)                             # ReLU, (64, tb) f32

    # ---- layers 2/3: bf16 MXU matmuls with f32 accumulation; bias/ReLU in f32.
    h = jnp.dot(w2_ref[...], h.astype(jnp.bfloat16),
                preferred_element_type=jnp.float32) + b2_ref[...]
    h = jnp.maximum(h, 0.0)                             # (128, tb) f32
    h = jnp.dot(w3_ref[...], h.astype(jnp.bfloat16),
                preferred_element_type=jnp.float32) + b3_ref[...]
    h = jnp.maximum(h, 0.0)                             # (64, tb)  f32

    # ---- layer 4: (8,64) @ (64,tb). The 5 real output rows are padded to 8
    # sublanes so the store is a full, unmasked lane-dense slab.
    h = jnp.dot(w4_ref[...], h.astype(jnp.bfloat16),
                preferred_element_type=jnp.float32) + b4_ref[...]
    o_ref[...] = jax.nn.sigmoid(h).astype(o_ref.dtype)  # Sigmoid, (8, tb)


def colornet_forward(x, params, *, tb=1024):
    """x: (B, 4) float32. params: weights stored (in_features, out_features),
    biases (1, out_features) (torch.nn.Linear layout, pre-transposed).
    Returns (B, 5) = sigmoid(relu-chain(x @ W + b))."""
    B, F = x.shape
    assert F == 4

    # One-time layout/dtype prep: feature-major, bf16 weights for the MXU layers.
    w1t = params["w1"].T.astype(jnp.float32)                               # (64, 4)
    b1t = params["b1"].T.astype(jnp.float32)                               # (64, 1)
    w2t = params["w2"].T.astype(jnp.bfloat16)                              # (128, 64)
    b2t = params["b2"].T.astype(jnp.float32)                               # (128, 1)
    w3t = params["w3"].T.astype(jnp.bfloat16)                              # (64, 128)
    b3t = params["b3"].T.astype(jnp.float32)                               # (64, 1)
    w4t = jnp.pad(params["w4"].T, ((0, 3), (0, 0))).astype(jnp.bfloat16)   # (8, 64)
    b4t = jnp.pad(params["b4"].T, ((0, 3), (0, 0))).astype(jnp.float32)    # (8, 1)

    # Batch tile: multiple of 128 so the last (lane) dim of every block is dense.
    # Small batches collapse to a single tile / single grid step.
    tb = min(tb, max(128, pl.cdiv(B, 128) * 128))
    grid = pl.cdiv(B, tb)
    Bp = grid * tb
    xt = x.astype(jnp.float32).T                                           # (4, B)
    if Bp != B:
        xt = jnp.pad(xt, ((0, 0), (0, Bp - B)))

    weight_bytes = sum(int(a.size) * a.dtype.itemsize
                       for a in (w1t, b1t, w2t, b2t, w3t, b3t, w4t, b4t))
    cost = pl.CostEstimate(
        flops=2 * Bp * (4 * 64 + 64 * 128 + 128 * 64 + 64 * 8),
        transcendentals=8 * Bp,                        # sigmoid -> exp
        bytes_accessed=Bp * (4 + 8) * 4 + weight_bytes)

    def resident(arr):
        # Full-array block, grid-invariant index -> stays VMEM-resident across
        # the whole batch loop.
        return pl.BlockSpec(arr.shape, lambda i: (0, 0))

    out = pl.pallas_call(
        colornet_kernel,
        out_shape=jax.ShapeDtypeStruct((8, Bp), jnp.float32),
        grid_spec=pltpu.PrefetchScalarGridSpec(
            num_scalar_prefetch=0,
            grid=(grid,),
            in_specs=[
                pl.BlockSpec((4, tb), lambda i: (0, i)),   # x^T batch tile
                resident(w1t), resident(b1t),
                resident(w2t), resident(b2t),
                resident(w3t), resident(b3t),
                resident(w4t), resident(b4t),
            ],
            out_specs=pl.BlockSpec((8, tb), lambda i: (0, i)),
        ),
        compiler_params=pltpu.CompilerParams(
            dimension_semantics=("parallel",)),
        cost_estimate=cost,
    )(xt, w1t, b1t, w2t, b2t, w3t, b3t, w4t, b4t)

    # Drop padded output rows (5 real logits) and padded batch columns.
    return out[:5, :B].T


def init_params(key):
    """Deterministic init mimicking PyTorch nn.Linear defaults
    (uniform(-1/sqrt(fan_in), 1/sqrt(fan_in)) for both W and b)."""
    dims = [(4, 64), (64, 128), (128, 64), (64, 5)]
    params = {}
    keys = jax.random.split(key, 2 * len(dims))
    for idx, (fin, fout) in enumerate(dims):
        bound = 1.0 / jnp.sqrt(fin)
        w = jax.random.uniform(keys[2 * idx], (fin, fout), jnp.float32,
                               minval=-bound, maxval=bound)
        b = jax.random.uniform(keys[2 * idx + 1], (1, fout), jnp.float32,
                               minval=-bound, maxval=bound)
        params[f"w{idx + 1}"] = w
        params[f"b{idx + 1}"] = b
    return params


def reference_forward(x, p):
    h = jnp.maximum(x @ p["w1"] + p["b1"], 0.0)
    h = jnp.maximum(h @ p["w2"] + p["b2"], 0.0)
    h = jnp.maximum(h @ p["w3"] + p["b3"], 0.0)
    return jax.nn.sigmoid(h @ p["w4"] + p["b4"])


if __name__ == "__main__":
    key = jax.random.PRNGKey(0)
    pkey, xkey = jax.random.split(key)
    params = init_params(pkey)

    # Small ragged batch: single grid step, padded up to one 256-wide tile.
    B = 200
    x = jax.random.normal(xkey, (B, 4), jnp.float32)
    ref = reference_forward(x, params)

    out = jax.block_until_ready(colornet_forward(x, params))
    assert out.shape == (B, 5)
    # bf16 matmuls with f32 accumulation -> loosened tolerance vs the f32 reference.
    assert jnp.allclose(out, ref, atol=2e-2, rtol=2e-2), "mismatch vs JAX reference"

    # Multi-step grid + ragged padding path (tb=128 -> grid=2, Bp=256).
    out2 = jax.block_until_ready(colornet_forward(x, params, tb=128))
    assert out2.shape == (B, 5)
    assert jnp.allclose(out2, ref, atol=2e-2, rtol=2e-2), \
        "mismatch vs JAX reference (tiled)"

    print("KERNEL_OK")
</pallas_src>

<mosaic_0001>
module attributes {stable_mosaic.version = 11 : i64} {
  func.func @colornet_kernel(%arg0: i32, %arg1: memref<4x256xf32, #tpu.memory_space<vmem>>, %arg2: memref<64x4xf32, #tpu.memory_space<vmem>>, %arg3: memref<64x1xf32, #tpu.memory_space<vmem>>, %arg4: memref<128x64xbf16, #tpu.memory_space<vmem>>, %arg5: memref<128x1xf32, #tpu.memory_space<vmem>>, %arg6: memref<64x128xbf16, #tpu.memory_space<vmem>>, %arg7: memref<64x1xf32, #tpu.memory_space<vmem>>, %arg8: memref<8x64xbf16, #tpu.memory_space<vmem>>, %arg9: memref<8x1xf32, #tpu.memory_space<vmem>>, %arg10: memref<8x256xf32, #tpu.memory_space<vmem>>) attributes {dimension_semantics = [#tpu.dimension_semantics<parallel>], iteration_bounds = array<i64: 1>, scalar_prefetch = 0 : i64, scratch_operands = 0 : i64, tpu.core_type = #tpu.core_type<tc>, window_params = [{transform_indices = @transform_0, window_bounds = array<i64: 4, 256>}, {pipeline_mode = #tpu.pipeline_mode<synchronous>, transform_indices = @transform_1, window_bounds = array<i64: 64, 4>}, {pipeline_mode = #tpu.pipeline_mode<synchronous>, transform_indices = @transform_2, window_bounds = array<i64: 64, 1>}, {pipeline_mode = #tpu.pipeline_mode<synchronous>, transform_indices = @transform_3, window_bounds = array<i64: 128, 64>}, {pipeline_mode = #tpu.pipeline_mode<synchronous>, transform_indices = @transform_4, window_bounds = array<i64: 128, 1>}, {pipeline_mode = #tpu.pipeline_mode<synchronous>, transform_indices = @transform_5, window_bounds = array<i64: 64, 128>}, {pipeline_mode = #tpu.pipeline_mode<synchronous>, transform_indices = @transform_6, window_bounds = array<i64: 64, 1>}, {pipeline_mode = #tpu.pipeline_mode<synchronous>, transform_indices = @transform_7, window_bounds = array<i64: 8, 64>}, {pipeline_mode = #tpu.pipeline_mode<synchronous>, transform_indices = @transform_8, window_bounds = array<i64: 8, 1>}, {transform_indices = @transform_9, window_bounds = array<i64: 8, 256>}]} {
    %c0 = arith.constant 0 : index
    %c0_0 = arith.constant 0 : index
    %0 = vector.load %arg1[%c0, %c0_0] : memref<4x256xf32, #tpu.memory_space<vmem>>, vector<4x256xf32>
    %c0_1 = arith.constant 0 : index
    %c0_2 = arith.constant 0 : index
    %1 = vector.load %arg2[%c0_1, %c0_2] : memref<64x4xf32, #tpu.memory_space<vmem>>, vector<64x4xf32>
    %c0_3 = arith.constant 0 : index
    %c0_4 = arith.constant 0 : index
    %2 = vector.load %arg3[%c0_3, %c0_4] : memref<64x1xf32, #tpu.memory_space<vmem>>, vector<64x1xf32>
    %3 = vector.extract_strided_slice %1 {offsets = [0, 0], sizes = [64, 1], strides = [1, 1]} : vector<64x4xf32> to vector<64x1xf32>
    %4 = vector.extract_strided_slice %0 {offsets = [0, 0], sizes = [1, 256], strides = [1, 1]} : vector<4x256xf32> to vector<1x256xf32>
    %5 = vector.broadcast %3 : vector<64x1xf32> to vector<64x256xf32>
    %6 = vector.broadcast %4 : vector<1x256xf32> to vector<64x256xf32>
    %7 = arith.mulf %5, %6 : vector<64x256xf32>
    %8 = vector.broadcast %2 : vector<64x1xf32> to vector<64x256xf32>
    %9 = arith.addf %8, %7 : vector<64x256xf32>
    %10 = vector.extract_strided_slice %1 {offsets = [0, 1], sizes = [64, 1], strides = [1, 1]} : vector<64x4xf32> to vector<64x1xf32>
    %11 = vector.extract_strided_slice %0 {offsets = [1, 0], sizes = [1, 256], strides = [1, 1]} : vector<4x256xf32> to vector<1x256xf32>
    %12 = vector.broadcast %10 : vector<64x1xf32> to vector<64x256xf32>
    %13 = vector.broadcast %11 : vector<1x256xf32> to vector<64x256xf32>
    %14 = arith.mulf %12, %13 : vector<64x256xf32>
    %15 = arith.addf %9, %14 : vector<64x256xf32>
    %16 = vector.extract_strided_slice %1 {offsets = [0, 2], sizes = [64, 1], strides = [1, 1]} : vector<64x4xf32> to vector<64x1xf32>
    %17 = vector.extract_strided_slice %0 {offsets = [2, 0], sizes = [1, 256], strides = [1, 1]} : vector<4x256xf32> to vector<1x256xf32>
    %18 = vector.broadcast %16 : vector<64x1xf32> to vector<64x256xf32>
    %19 = vector.broadcast %17 : vector<1x256xf32> to vector<64x256xf32>
    %20 = arith.mulf %18, %19 : vector<64x256xf32>
    %21 = arith.addf %15, %20 : vector<64x256xf32>
    %22 = vector.extract_strided_slice %1 {offsets = [0, 3], sizes = [64, 1], strides = [1, 1]} : vector<64x4xf32> to vector<64x1xf32>
    %23 = vector.extract_strided_slice %0 {offsets = [3, 0], sizes = [1, 256], strides = [1, 1]} : vector<4x256xf32> to vector<1x256xf32>
    %24 = vector.broadcast %22 : vector<64x1xf32> to vector<64x256xf32>
    %25 = vector.broadcast %23 : vector<1x256xf32> to vector<64x256xf32>
    %26 = arith.mulf %24, %25 : vector<64x256xf32>
    %27 = arith.addf %21, %26 : vector<64x256xf32>
    %cst = arith.constant 0.000000e+00 : f32
    %28 = vector.broadcast %cst : f32 to vector<64x256xf32>
    %29 = arith.maximumf %27, %28 : vector<64x256xf32>
    %c0_5 = arith.constant 0 : index
    %c0_6 = arith.constant 0 : index
    %30 = vector.load %arg4[%c0_5, %c0_6] : memref<128x64xbf16, #tpu.memory_space<vmem>>, vector<128x64xbf16>
    %31 = arith.truncf %29 : vector<64x256xf32> to vector<64x256xbf16>
    %cst_7 = arith.constant dense<0.000000e+00> : vector<128x256xf32>
    %32 = tpu.matmul %30, %31, %cst_7 {dimension_numbers = #tpu.dot_dimension_numbers<[1], [0], [0], [1], [0, 0, 1, 1], [], []>} : vector<128x64xbf16>, vector<64x256xbf16>, vector<128x256xf32> -> vector<128x256xf32>
    %c0_8 = arith.constant 0 : index
    %c0_9 = arith.constant 0 : index
    %33 = vector.load %arg5[%c0_8, %c0_9] : memref<128x1xf32, #tpu.memory_space<vmem>>, vector<128x1xf32>
    %34 = vector.broadcast %33 : vector<128x1xf32> to vector<128x256xf32>
    %35 = arith.addf %32, %34 : vector<128x256xf32>
    %cst_10 = arith.constant 0.000000e+00 : f32
    %36 = vector.broadcast %cst_10 : f32 to vector<128x256xf32>
    %37 = arith.maximumf %35, %36 : vector<128x256xf32>
    %c0_11 = arith.constant 0 : index
    %c0_12 = arith.constant 0 : index
    %38 = vector.load %arg6[%c0_11, %c0_12] : memref<64x128xbf16, #tpu.memory_space<vmem>>, vector<64x128xbf16>
    %39 = arith.truncf %37 : vector<128x256xf32> to vector<128x256xbf16>
    %cst_13 = arith.constant dense<0.000000e+00> : vector<64x256xf32>
    %40 = tpu.matmul %38, %39, %cst_13 {dimension_numbers = #tpu.dot_dimension_numbers<[1], [0], [0], [1], [0, 0, 1, 1], [], []>} : vector<64x128xbf16>, vector<128x256xbf16>, vector<64x256xf32> -> vector<64x256xf32>
    %c0_14 = arith.constant 0 : index
    %c0_15 = arith.constant 0 : index
    %41 = vector.load %arg7[%c0_14, %c0_15] : memref<64x1xf32, #tpu.memory_space<vmem>>, vector<64x1xf32>
    %42 = vector.broadcast %41 : vector<64x1xf32> to vector<64x256xf32>
    %43 = arith.addf %40, %42 : vector<64x256xf32>
    %cst_16 = arith.constant 0.000000e+00 : f32
    %44 = vector.broadcast %cst_16 : f32 to vector<64x256xf32>
    %45 = arith.maximumf %43, %44 : vector<64x256xf32>
    %c0_17 = arith.constant 0 : index
    %c0_18 = arith.constant 0 : index
    %46 = vector.load %arg8[%c0_17, %c0_18] : memref<8x64xbf16, #tpu.memory_space<vmem>>, vector<8x64xbf16>
    %47 = arith.truncf %45 : vector<64x256xf32> to vector<64x256xbf16>
    %cst_19 = arith.constant dense<0.000000e+00> : vector<8x256xf32>
    %48 = tpu.matmul %46, %47, %cst_19 {dimension_numbers = #tpu.dot_dimension_numbers<[1], [0], [0], [1], [0, 0, 1, 1], [], []>} : vector<8x64xbf16>, vector<64x256xbf16>, vector<8x256xf32> -> vector<8x256xf32>
    %c0_20 = arith.constant 0 : index
    %c0_21 = arith.constant 0 : index
    %49 = vector.load %arg9[%c0_20, %c0_21] : memref<8x1xf32, #tpu.memory_space<vmem>>, vector<8x1xf32>
    %50 = vector.broadcast %49 : vector<8x1xf32> to vector<8x256xf32>
    %51 = arith.addf %48, %50 : vector<8x256xf32>
    %52 = arith.negf %51 : vector<8x256xf32>
    %53 = math.exp %52 : vector<8x256xf32>
    %cst_22 = arith.constant 1.000000e+00 : f32
    %54 = vector.broadcast %cst_22 : f32 to vector<8x256xf32>
    %55 = arith.addf %54, %53 : vector<8x256xf32>
    %56 = arith.divf %54, %55 : vector<8x256xf32>
    %c0_23 = arith.constant 0 : index
    %c0_24 = arith.constant 0 : index
    %57 = vector.load %arg10[%c0_23, %c0_24] : memref<8x256xf32, #tpu.memory_space<vmem>>, vector<8x256xf32>
    tpu.vector_store %arg10[%c0_23, %c0_24], %56 {strides = array<i32>} : memref<8x256xf32, #tpu.memory_space<vmem>>, vector<8x256xf32>,
    return
  }
  func.func @transform_0(%arg0: i32) -> (i32, i32) {
    %c0_i32 = arith.constant 0 : i32
    %c0_i32_0 = arith.constant 0 : i32
    return %c0_i32, %arg0 : i32, i32
  }
  func.func @transform_1(%arg0: i32) -> (i32, i32) {
    %c0_i32 = arith.constant 0 : i32
    %c0_i32_0 = arith.constant 0 : i32
    %c0_i32_1 = arith.constant 0 : i32
    return %c0_i32, %c0_i32_0 : i32, i32
  }
  func.func @transform_2(%arg0: i32) -> (i32, i32) {
    %c0_i32 = arith.constant 0 : i32
    %c0_i32_0 = arith.constant 0 : i32
    %c0_i32_1 = arith.constant 0 : i32
    return %c0_i32, %c0_i32_0 : i32, i32
  }
  func.func @transform_3(%arg0: i32) -> (i32, i32) {
    %c0_i32 = arith.constant 0 : i32
    %c0_i32_0 = arith.constant 0 : i32
    %c0_i32_1 = arith.constant 0 : i32
    return %c0_i32, %c0_i32_0 : i32, i32
  }
  func.func @transform_4(%arg0: i32) -> (i32, i32) {
    %c0_i32 = arith.constant 0 : i32
    %c0_i32_0 = arith.constant 0 : i32
    %c0_i32_1 = arith.constant 0 : i32
    return %c0_i32, %c0_i32_0 : i32, i32
  }
  func.func @transform_5(%arg0: i32) -> (i32, i32) {
    %c0_i32 = arith.constant 0 : i32
    %c0_i32_0 = arith.constant 0 : i32
    %c0_i32_1 = arith.constant 0 : i32
    return %c0_i32, %c0_i32_0 : i32, i32
  }
  func.func @transform_6(%arg0: i32) -> (i32, i32) {
    %c0_i32 = arith.constant 0 : i32
    %c0_i32_0 = arith.constant 0 : i32
    %c0_i32_1 = arith.constant 0 : i32
    return %c0_i32, %c0_i32_0 : i32, i32
  }
  func.func @transform_7(%arg0: i32) -> (i32, i32) {
    %c0_i32 = arith.constant 0 : i32
    %c0_i32_0 = arith.constant 0 : i32
    %c0_i32_1 = arith.constant 0 : i32
    return %c0_i32, %c0_i32_0 : i32, i32
  }
  func.func @transform_8(%arg0: i32) -> (i32, i32) {
    %c0_i32 = arith.constant 0 : i32
    %c0_i32_0 = arith.constant 0 : i32
    %c0_i32_1 = arith.constant 0 : i32
    return %c0_i32, %c0_i32_0 : i32, i32
  }
  func.func @transform_9(%arg0: i32) -> (i32, i32) {
    %c0_i32 = arith.constant 0 : i32
    %c0_i32_0 = arith.constant 0 : i32
    return %c0_i32, %arg0 : i32, i32
  }
}

</mosaic_0001>

<llo_original>
// kernel: tpu_custom_call.1
$region0: #{tpu_custom_call.1}
  #allocation0 [shape = 'u32[]', space=smem, size = 0x4, offset = 0x4, fixed_abs, tag = 'smem constant byte address 0x4 - core index']
  #allocation1 [shape = 'u32[144,128]{1,0:T(1,128)}', space=vmem, size = 0x12000, scoped, tag = 'internal scratch']
  %s0 = inlined_call_operand.vmem [shape: f32[4,256], index: 0, kind: input, shape index: {}]
  %s1 = inlined_call_operand.vmem [shape: f32[64,4], index: 1, kind: input, shape index: {}]
  %s2 = inlined_call_operand.vmem [shape: f32[64,1], index: 2, kind: input, shape index: {}]
  %s3 = inlined_call_operand.vmem [shape: bf16[128,64], index: 3, kind: input, shape index: {}]
  %s4 = inlined_call_operand.vmem [shape: f32[128,1], index: 4, kind: input, shape index: {}]
  %s5 = inlined_call_operand.vmem [shape: bf16[64,128], index: 5, kind: input, shape index: {}]
  %s6 = inlined_call_operand.vmem [shape: f32[64,1], index: 6, kind: input, shape index: {}]
  %s7 = inlined_call_operand.vmem [shape: bf16[8,64], index: 7, kind: input, shape index: {}]
  %s8 = inlined_call_operand.vmem [shape: f32[8,1], index: 8, kind: input, shape index: {}]
  %s9 = inlined_call_operand.hbm [shape: f32[8,256], index: 9, kind: output, shape index: {}]
  %s10 = sld [smem:[#allocation0]]
  $region46: #{tpu_custom_call.1} parent=0
    _
  %s12 = ssub.s32 1, %s10
  %s13 = scalar_select 0, %s12, %s10
  $region1: #{tpu_custom_call.1} parent=0
    #allocation2 [shape = 'u8[8192]{0}', space=vmem, size = 0x2000, scoped, tag = 'output window, operand 0, single buffered']
    #allocation3 [shape = 's32[1]{0}', space=sflag, size = 0x4, scoped, tag = 'scoped memory for tpu_custom_call.1']
    %14 = vsyncpa [#allocation3], 0
    // Predicated region
    $region2: #{tpu_custom_call.1} parent=1 // pred_check
      _
    $region3: #{tpu_custom_call.1} parent=1 // pred_check_branch
      %16 = sbr.rel (0) target = $region5
    $region4: #{tpu_custom_call.1} parent=1 // pred_region
      _
    $region5: #{tpu_custom_call.1} parent=1 // pred_fallthru
      _
    // Predicated region
    $region6: #{tpu_custom_call.1} parent=1 // pred_check
      _
    $region7: #{tpu_custom_call.1} parent=1 // pred_check_branch
      %18 = sbr.rel (0) target = $region9
    $region8: #{tpu_custom_call.1} parent=1 // pred_region
      _
    $region9: #{tpu_custom_call.1} parent=1 // pred_fallthru
      _
    // Predicated region
    $region10: #{tpu_custom_call.1} parent=1 // pred_check
      _
    $region11: #{tpu_custom_call.1} parent=1 // pred_check_branch
      %20 = sbr.rel (0) target = $region13
    $region12: #{tpu_custom_call.1} parent=1 // pred_region
      _
    $region13: #{tpu_custom_call.1} parent=1 // pred_fallthru
      _
    // Predicated region
    $region14: #{tpu_custom_call.1} parent=1 // pred_check
      _
    $region15: #{tpu_custom_call.1} parent=1 // pred_check_branch
      %22 = sbr.rel (0) target = $region17
    $region16: #{tpu_custom_call.1} parent=1 // pred_region
      _
    $region17: #{tpu_custom_call.1} parent=1 // pred_fallthru
      _
    // Predicated region
    $region18: #{tpu_custom_call.1} parent=1 // pred_check
      _
    $region19: #{tpu_custom_call.1} parent=1 // pred_check_branch
      %24 = sbr.rel (0) target = $region21
    $region20: #{tpu_custom_call.1} parent=1 // pred_region
      _
    $region21: #{tpu_custom_call.1} parent=1 // pred_fallthru
      _
    // Predicated region
    $region22: #{tpu_custom_call.1} parent=1 // pred_check
      _
    $region23: #{tpu_custom_call.1} parent=1 // pred_check_branch
      %26 = sbr.rel (0) target = $region25
    $region24: #{tpu_custom_call.1} parent=1 // pred_region
      _
    $region25: #{tpu_custom_call.1} parent=1 // pred_fallthru
      _
    // Predicated region
    $region26: #{tpu_custom_call.1} parent=1 // pred_check
      _
    $region27: #{tpu_custom_call.1} parent=1 // pred_check_branch
      %28 = sbr.rel (0) target = $region29
    $region28: #{tpu_custom_call.1} parent=1 // pred_region
      _
    $region29: #{tpu_custom_call.1} parent=1 // pred_fallthru
      _
    // Predicated region
    $region30: #{tpu_custom_call.1} parent=1 // pred_check
      _
    $region31: #{tpu_custom_call.1} parent=1 // pred_check_branch
      %30 = sbr.rel (0) target = $region33
    $region32: #{tpu_custom_call.1} parent=1 // pred_region
      _
    $region33: #{tpu_custom_call.1} parent=1 // pred_fallthru
      _
    // Predicated region
    $region34: #{tpu_custom_call.1} parent=1 // pred_check
      _
    $region35: #{tpu_custom_call.1} parent=1 // pred_check_branch
      %32 = sbr.rel (0) target = $region37
    $region36: #{tpu_custom_call.1} parent=1 // pred_region
      _
    $region37: #{tpu_custom_call.1} parent=1 // pred_fallthru
      _
    %v34 = vld [vmem:[%s0] sm:$0xff]
    %v35 = vld [vmem:[%s1] sm:$0xff]
    %v36 = vld [vmem:[%s1 + $0x8] sm:$0xff]
    %v37 = vld [vmem:[%s1 + $0x10] sm:$0xff]
    %v38 = vld [vmem:[%s1 + $0x18] sm:$0xff]
    %v39 = vld [vmem:[%s1 + $0x20] sm:$0xff]
    %v40 = vld [vmem:[%s1 + $0x28] sm:$0xff]
    %v41 = vld [vmem:[%s1 + $0x30] sm:$0xff]
    %v42 = vld [vmem:[%s1 + $0x38] sm:$0xff]
    %v43 = vld [vmem:[%s2] sm:$0xff]
    %v44 = vld [vmem:[%s2 + $0x8] sm:$0xff]
    %v45 = vld [vmem:[%s2 + $0x10] sm:$0xff]
    %v46 = vld [vmem:[%s2 + $0x18] sm:$0xff]
    %v47 = vld [vmem:[%s2 + $0x20] sm:$0xff]
    %v48 = vld [vmem:[%s2 + $0x28] sm:$0xff]
    %v49 = vld [vmem:[%s2 + $0x30] sm:$0xff]
    %v50 = vld [vmem:[%s2 + $0x38] sm:$0xff]
    %52 = vset.pattern.permute.xlu0 0
    %53 = vperm.xlu0 %52, %v35
    %v54 = vpop.permute.xlu0 %53
    %57 = vset.pattern.permute.xlu0 0
    %58 = vperm.xlu0 %57, %v36
    %v59 = vpop.permute.xlu0 %58
    %62 = vset.pattern.permute.xlu0 0
    %63 = vperm.xlu0 %62, %v37
    %v64 = vpop.permute.xlu0 %63
    %67 = vset.pattern.permute.xlu0 0
    %68 = vperm.xlu0 %67, %v38
    %v69 = vpop.permute.xlu0 %68
    %72 = vset.pattern.permute.xlu0 0
    %73 = vperm.xlu0 %72, %v39
    %v74 = vpop.permute.xlu0 %73
    %77 = vset.pattern.permute.xlu0 0
    %78 = vperm.xlu0 %77, %v40
    %v79 = vpop.permute.xlu0 %78
    %82 = vset.pattern.permute.xlu0 0
    %83 = vperm.xlu0 %82, %v41
    %v84 = vpop.permute.xlu0 %83
    %87 = vset.pattern.permute.xlu0 0
    %88 = vperm.xlu0 %87, %v42
    %v89 = vpop.permute.xlu0 %88
    %v92 = vlaneseq
    %v93 = vshrl.u32 %v92, 7
    %v94 = vsub.s32 0, %v93
    %v95 = vrot.slane %v34, %v94
    %v96 = vlaneseq
    %v97 = vshrl.u32 %v96, 7
    %v98 = vsub.s32 4, %v97
    %v99 = vrot.slane %v34, %v98
    %v102 = vlaneseq
    %v103 = vshrl.u32 %v102, 7
    %v104 = vsub.s32 0, %v103
    %v105 = vrot.slane %v95, %v104
    %v106 = vlaneseq
    %v107 = vshrl.u32 %v106, 7
    %v108 = vsub.s32 0, %v107
    %v109 = vrot.slane %v99, %v108
    %v110 = vmul.f32 %v54, %v105
    %v111 = vmul.f32 %v54, %v109
    %v112 = vmul.f32 %v59, %v105
    %v113 = vmul.f32 %v59, %v109
    %v114 = vmul.f32 %v64, %v105
    %v115 = vmul.f32 %v64, %v109
    %v116 = vmul.f32 %v69, %v105
    %v117 = vmul.f32 %v69, %v109
    %v118 = vmul.f32 %v74, %v105
    %v119 = vmul.f32 %v74, %v109
    %v120 = vmul.f32 %v79, %v105
    %v121 = vmul.f32 %v79, %v109
    %v122 = vmul.f32 %v84, %v105
    %v123 = vmul.f32 %v84, %v109
    %v124 = vmul.f32 %v89, %v105
    %v125 = vmul.f32 %v89, %v109
    %127 = vset.pattern.permute.xlu0 0
    %128 = vperm.xlu0 %127, %v43
    %v129 = vpop.permute.xlu0 %128
    %132 = vset.pattern.permute.xlu0 0
    %133 = vperm.xlu0 %132, %v44
    %v134 = vpop.permute.xlu0 %133
    %137 = vset.pattern.permute.xlu0 0
    %138 = vperm.xlu0 %137, %v45
    %v139 = vpop.permute.xlu0 %138
    %142 = vset.pattern.permute.xlu0 0
    %143 = vperm.xlu0 %142, %v46
    %v144 = vpop.permute.xlu0 %143
    %147 = vset.pattern.permute.xlu0 0
    %148 = vperm.xlu0 %147, %v47
    %v149 = vpop.permute.xlu0 %148
    %152 = vset.pattern.permute.xlu0 0
    %153 = vperm.xlu0 %152, %v48
    %v154 = vpop.permute.xlu0 %153
    %157 = vset.pattern.permute.xlu0 0
    %158 = vperm.xlu0 %157, %v49
    %v159 = vpop.permute.xlu0 %158
    %162 = vset.pattern.permute.xlu0 0
    %163 = vperm.xlu0 %162, %v50
    %v164 = vpop.permute.xlu0 %163
    %v166 = vadd.f32 %v129, %v110
    %v167 = vadd.f32 %v129, %v111
    %v168 = vadd.f32 %v134, %v112
    %v169 = vadd.f32 %v134, %v113
    %v170 = vadd.f32 %v139, %v114
    %v171 = vadd.f32 %v139, %v115
    %v172 = vadd.f32 %v144, %v116
    %v173 = vadd.f32 %v144, %v117
    %v174 = vadd.f32 %v149, %v118
    %v175 = vadd.f32 %v149, %v119
    %v176 = vadd.f32 %v154, %v120
    %v177 = vadd.f32 %v154, %v121
    %v178 = vadd.f32 %v159, %v122
    %v179 = vadd.f32 %v159, %v123
    %v180 = vadd.f32 %v164, %v124
    %v181 = vadd.f32 %v164, %v125
    %182 = vset.pattern.permute.xlu0 1
    %183 = vperm.xlu0 %182, %v35
    %v184 = vpop.permute.xlu0 %183
    %186 = vset.pattern.permute.xlu0 1
    %187 = vperm.xlu0 %186, %v36
    %v188 = vpop.permute.xlu0 %187
    %190 = vset.pattern.permute.xlu0 1
    %191 = vperm.xlu0 %190, %v37
    %v192 = vpop.permute.xlu0 %191
    %194 = vset.pattern.permute.xlu0 1
    %195 = vperm.xlu0 %194, %v38
    %v196 = vpop.permute.xlu0 %195
    %198 = vset.pattern.permute.xlu0 1
    %199 = vperm.xlu0 %198, %v39
    %v200 = vpop.permute.xlu0 %199
    %202 = vset.pattern.permute.xlu0 1
    %203 = vperm.xlu0 %202, %v40
    %v204 = vpop.permute.xlu0 %203
    %206 = vset.pattern.permute.xlu0 1
    %207 = vperm.xlu0 %206, %v41
    %v208 = vpop.permute.xlu0 %207
    %210 = vset.pattern.permute.xlu0 1
    %211 = vperm.xlu0 %210, %v42
    %v212 = vpop.permute.xlu0 %211
    %v214 = vlaneseq
    %v215 = vshrl.u32 %v214, 7
    %v216 = vsub.s32 1, %v215
    %v217 = vrot.slane %v34, %v216
    %v218 = vlaneseq
    %v219 = vshrl.u32 %v218, 7
    %v220 = vsub.s32 5, %v219
    %v221 = vrot.slane %v34, %v220
    %v224 = vlaneseq
    %v225 = vshrl.u32 %v224, 7
    %v226 = vsub.s32 1, %v225
    %v227 = vrot.slane %v217, %v226
    %v228 = vlaneseq
    %v229 = vshrl.u32 %v228, 7
    %v230 = vsub.s32 1, %v229
    %v231 = vrot.slane %v221, %v230
    %v232 = vmul.f32 %v184, %v227
    %v233 = vmul.f32 %v184, %v231
    %v234 = vmul.f32 %v188, %v227
    %v235 = vmul.f32 %v188, %v231
    %v236 = vmul.f32 %v192, %v227
    %v237 = vmul.f32 %v192, %v231
    %v238 = vmul.f32 %v196, %v227
    %v239 = vmul.f32 %v196, %v231
    %v240 = vmul.f32 %v200, %v227
    %v241 = vmul.f32 %v200, %v231
    %v242 = vmul.f32 %v204, %v227
    %v243 = vmul.f32 %v204, %v231
    %v244 = vmul.f32 %v208, %v227
    %v245 = vmul.f32 %v208, %v231
    %v246 = vmul.f32 %v212, %v227
    %v247 = vmul.f32 %v212, %v231
    %v248 = vadd.f32 %v166, %v232
    %v249 = vadd.f32 %v167, %v233
    %v250 = vadd.f32 %v168, %v234
    %v251 = vadd.f32 %v169, %v235
    %v252 = vadd.f32 %v170, %v236
    %v253 = vadd.f32 %v171, %v237
    %v254 = vadd.f32 %v172, %v238
    %v255 = vadd.f32 %v173, %v239
    %v256 = vadd.f32 %v174, %v240
    %v257 = vadd.f32 %v175, %v241
    %v258 = vadd.f32 %v176, %v242
    %v259 = vadd.f32 %v177, %v243
    %v260 = vadd.f32 %v178, %v244
    %v261 = vadd.f32 %v179, %v245
    %v262 = vadd.f32 %v180, %v246
    %v263 = vadd.f32 %v181, %v247
    %264 = vset.pattern.permute.xlu0 2
    %265 = vperm.xlu0 %264, %v35
    %v266 = vpop.permute.xlu0 %265
    %268 = vset.pattern.permute.xlu0 2
    %269 = vperm.xlu0 %268, %v36
    %v270 = vpop.permute.xlu0 %269
    %272 = vset.pattern.permute.xlu0 2
    %273 = vperm.xlu0 %272, %v37
    %v274 = vpop.permute.xlu0 %273
    %276 = vset.pattern.permute.xlu0 2
    %277 = vperm.xlu0 %276, %v38
    %v278 = vpop.permute.xlu0 %277
    %280 = vset.pattern.permute.xlu0 2
    %281 = vperm.xlu0 %280, %v39
    %v282 = vpop.permute.xlu0 %281
    %284 = vset.pattern.permute.xlu0 2
    %285 = vperm.xlu0 %284, %v40
    %v286 = vpop.permute.xlu0 %285
    %288 = vset.pattern.permute.xlu0 2
    %289 = vperm.xlu0 %288, %v41
    %v290 = vpop.permute.xlu0 %289
    %292 = vset.pattern.permute.xlu0 2
    %293 = vperm.xlu0 %292, %v42
    %v294 = vpop.permute.xlu0 %293
    %v296 = vlaneseq
    %v297 = vshrl.u32 %v296, 7
    %v298 = vsub.s32 2, %v297
    %v299 = vrot.slane %v34, %v298
    %v300 = vlaneseq
    %v301 = vshrl.u32 %v300, 7
    %v302 = vsub.s32 6, %v301
    %v303 = vrot.slane %v34, %v302
    %v306 = vlaneseq
    %v307 = vshrl.u32 %v306, 7
    %v308 = vsub.s32 2, %v307
    %v309 = vrot.slane %v299, %v308
    %v310 = vlaneseq
    %v311 = vshrl.u32 %v310, 7
    %v312 = vsub.s32 2, %v311
    %v313 = vrot.slane %v303, %v312
    %v314 = vmul.f32 %v266, %v309
    %v315 = vmul.f32 %v266, %v313
    %v316 = vmul.f32 %v270, %v309
    %v317 = vmul.f32 %v270, %v313
    %v318 = vmul.f32 %v274, %v309
    %v319 = vmul.f32 %v274, %v313
    %v320 = vmul.f32 %v278, %v309
    %v321 = vmul.f32 %v278, %v313
    %v322 = vmul.f32 %v282, %v309
    %v323 = vmul.f32 %v282, %v313
    %v324 = vmul.f32 %v286, %v309
    %v325 = vmul.f32 %v286, %v313
    %v326 = vmul.f32 %v290, %v309
    %v327 = vmul.f32 %v290, %v313
    %v328 = vmul.f32 %v294, %v309
    %v329 = vmul.f32 %v294, %v313
    %v330 = vadd.f32 %v248, %v314
    %v331 = vadd.f32 %v249, %v315
    %v332 = vadd.f32 %v250, %v316
    %v333 = vadd.f32 %v251, %v317
    %v334 = vadd.f32 %v252, %v318
    %v335 = vadd.f32 %v253, %v319
    %v336 = vadd.f32 %v254, %v320
    %v337 = vadd.f32 %v255, %v321
    %v338 = vadd.f32 %v256, %v322
    %v339 = vadd.f32 %v257, %v323
    %v340 = vadd.f32 %v258, %v324
    %v341 = vadd.f32 %v259, %v325
    %v342 = vadd.f32 %v260, %v326
    %v343 = vadd.f32 %v261, %v327
    %v344 = vadd.f32 %v262, %v328
    %v345 = vadd.f32 %v263, %v329
    %346 = vset.pattern.permute.xlu0 3
    %347 = vperm.xlu0 %346, %v35
    %v348 = vpop.permute.xlu0 %347
    %350 = vset.pattern.permute.xlu0 3
    %351 = vperm.xlu0 %350, %v36
    %v352 = vpop.permute.xlu0 %351
    %354 = vset.pattern.permute.xlu0 3
    %355 = vperm.xlu0 %354, %v37
    %v356 = vpop.permute.xlu0 %355
    %358 = vset.pattern.permute.xlu0 3
    %359 = vperm.xlu0 %358, %v38
    %v360 = vpop.permute.xlu0 %359
    %362 = vset.pattern.permute.xlu0 3
    %363 = vperm.xlu0 %362, %v39
    %v364 = vpop.permute.xlu0 %363
    %366 = vset.pattern.permute.xlu0 3
    %367 = vperm.xlu0 %366, %v40
    %v368 = vpop.permute.xlu0 %367
    %370 = vset.pattern.permute.xlu0 3
    %371 = vperm.xlu0 %370, %v41
    %v372 = vpop.permute.xlu0 %371
    %374 = vset.pattern.permute.xlu0 3
    %375 = vperm.xlu0 %374, %v42
    %v376 = vpop.permute.xlu0 %375
    %v378 = vlaneseq
    %v379 = vshrl.u32 %v378, 7
    %v380 = vsub.s32 3, %v379
    %v381 = vrot.slane %v34, %v380
    %v382 = vlaneseq
    %v383 = vshrl.u32 %v382, 7
    %v384 = vsub.s32 7, %v383
    %v385 = vrot.slane %v34, %v384
    %v388 = vlaneseq
    %v389 = vshrl.u32 %v388, 7
    %v390 = vsub.s32 3, %v389
    %v391 = vrot.slane %v381, %v390
    %v392 = vlaneseq
    %v393 = vshrl.u32 %v392, 7
    %v394 = vsub.s32 3, %v393
    %v395 = vrot.slane %v385, %v394
    %v396 = vmul.f32 %v348, %v391
    %v397 = vmul.f32 %v348, %v395
    %v398 = vmul.f32 %v352, %v391
    %v399 = vmul.f32 %v352, %v395
    %v400 = vmul.f32 %v356, %v391
    %v401 = vmul.f32 %v356, %v395
    %v402 = vmul.f32 %v360, %v391
    %v403 = vmul.f32 %v360, %v395
    %v404 = vmul.f32 %v364, %v391
    %v405 = vmul.f32 %v364, %v395
    %v406 = vmul.f32 %v368, %v391
    %v407 = vmul.f32 %v368, %v395
    %v408 = vmul.f32 %v372, %v391
    %v409 = vmul.f32 %v372, %v395
    %v410 = vmul.f32 %v376, %v391
    %v411 = vmul.f32 %v376, %v395
    %v412 = vadd.f32 %v330, %v396
    %v413 = vadd.f32 %v331, %v397
    %v414 = vadd.f32 %v332, %v398
    %v415 = vadd.f32 %v333, %v399
    %v416 = vadd.f32 %v334, %v400
    %v417 = vadd.f32 %v335, %v401
    %v418 = vadd.f32 %v336, %v402
    %v419 = vadd.f32 %v337, %v403
    %v420 = vadd.f32 %v338, %v404
    %v421 = vadd.f32 %v339, %v405
    %v422 = vadd.f32 %v340, %v406
    %v423 = vadd.f32 %v341, %v407
    %v424 = vadd.f32 %v342, %v408
    %v425 = vadd.f32 %v343, %v409
    %v426 = vadd.f32 %v344, %v410
    %v427 = vadd.f32 %v345, %v411
    %v428 = vmax.f32 %v412, 0.0
    %v429 = vmax.f32 %v413, 0.0
    %v430 = vmax.f32 %v414, 0.0
    %v431 = vmax.f32 %v415, 0.0
    %v432 = vmax.f32 %v416, 0.0
    %v433 = vmax.f32 %v417, 0.0
    %v434 = vmax.f32 %v418, 0.0
    %v435 = vmax.f32 %v419, 0.0
    %v436 = vmax.f32 %v420, 0.0
    %v437 = vmax.f32 %v421, 0.0
    %v438 = vmax.f32 %v422, 0.0
    %v439 = vmax.f32 %v423, 0.0
    %v440 = vmax.f32 %v424, 0.0
    %v441 = vmax.f32 %v425, 0.0
    %v442 = vmax.f32 %v426, 0.0
    %v443 = vmax.f32 %v427, 0.0
    %v444 = vld [vmem:[%s3] sm:$0xf]
    %v445 = vld [vmem:[%s3 + $0x4] sm:$0xf]
    %v446 = vld [vmem:[%s3 + $0x8] sm:$0xf]
    %v447 = vld [vmem:[%s3 + $0xc] sm:$0xf]
    %v448 = vld [vmem:[%s3 + $0x10] sm:$0xf]
    %v449 = vld [vmem:[%s3 + $0x14] sm:$0xf]
    %v450 = vld [vmem:[%s3 + $0x18] sm:$0xf]
    %v451 = vld [vmem:[%s3 + $0x1c] sm:$0xf]
    %v452 = vld [vmem:[%s3 + $0x20] sm:$0xf]
    %v453 = vld [vmem:[%s3 + $0x24] sm:$0xf]
    %v454 = vld [vmem:[%s3 + $0x28] sm:$0xf]
    %v455 = vld [vmem:[%s3 + $0x2c] sm:$0xf]
    %v456 = vld [vmem:[%s3 + $0x30] sm:$0xf]
    %v457 = vld [vmem:[%s3 + $0x34] sm:$0xf]
    %v458 = vld [vmem:[%s3 + $0x38] sm:$0xf]
    %v459 = vld [vmem:[%s3 + $0x3c] sm:$0xf]
    %v460 = vpack.c.bf16 %v430, %v428
    %v461 = vpack.c.bf16 %v431, %v429
    %v462 = vpack.c.bf16 %v434, %v432
    %v463 = vpack.c.bf16 %v435, %v433
    %v464 = vpack.c.bf16 %v438, %v436
    %v465 = vpack.c.bf16 %v439, %v437
    %v466 = vpack.c.bf16 %v442, %v440
    %v467 = vpack.c.bf16 %v443, %v441
    %v468 = vld [vmem:[%s4] sm:$0xff]
    %v469 = vld [vmem:[%s4 + $0x8] sm:$0xff]
    %v470 = vld [vmem:[%s4 + $0x10] sm:$0xff]
    %v471 = vld [vmem:[%s4 + $0x18] sm:$0xff]
    %v472 = vld [vmem:[%s4 + $0x20] sm:$0xff]
    %v473 = vld [vmem:[%s4 + $0x28] sm:$0xff]
    %v474 = vld [vmem:[%s4 + $0x30] sm:$0xff]
    %v475 = vld [vmem:[%s4 + $0x38] sm:$0xff]
    %v476 = vld [vmem:[%s4 + $0x40] sm:$0xff]
    %v477 = vld [vmem:[%s4 + $0x48] sm:$0xff]
    %v478 = vld [vmem:[%s4 + $0x50] sm:$0xff]
    %v479 = vld [vmem:[%s4 + $0x58] sm:$0xff]
    %v480 = vld [vmem:[%s4 + $0x60] sm:$0xff]
    %v481 = vld [vmem:[%s4 + $0x68] sm:$0xff]
    %v482 = vld [vmem:[%s4 + $0x70] sm:$0xff]
    %v483 = vld [vmem:[%s4 + $0x78] sm:$0xff]
    %485 = vset.pattern.permute.xlu0 0
    %486 = vperm.xlu0 %485, %v468
    %v487 = vpop.permute.xlu0 %486
    %490 = vset.pattern.permute.xlu0 0
    %491 = vperm.xlu0 %490, %v469
    %v492 = vpop.permute.xlu0 %491
    %495 = vset.pattern.permute.xlu0 0
    %496 = vperm.xlu0 %495, %v470
    %v497 = vpop.permute.xlu0 %496
    %500 = vset.pattern.permute.xlu0 0
    %501 = vperm.xlu0 %500, %v471
    %v502 = vpop.permute.xlu0 %501
    %505 = vset.pattern.permute.xlu0 0
    %506 = vperm.xlu0 %505, %v472
    %v507 = vpop.permute.xlu0 %506
    %510 = vset.pattern.permute.xlu0 0
    %511 = vperm.xlu0 %510, %v473
    %v512 = vpop.permute.xlu0 %511
    %515 = vset.pattern.permute.xlu0 0
    %516 = vperm.xlu0 %515, %v474
    %v517 = vpop.permute.xlu0 %516
    %520 = vset.pattern.permute.xlu0 0
    %521 = vperm.xlu0 %520, %v475
    %v522 = vpop.permute.xlu0 %521
    %525 = vset.pattern.permute.xlu0 0
    %526 = vperm.xlu0 %525, %v476
    %v527 = vpop.permute.xlu0 %526
    %530 = vset.pattern.permute.xlu0 0
    %531 = vperm.xlu0 %530, %v477
    %v532 = vpop.permute.xlu0 %531
    %535 = vset.pattern.permute.xlu0 0
    %536 = vperm.xlu0 %535, %v478
    %v537 = vpop.permute.xlu0 %536
    %540 = vset.pattern.permute.xlu0 0
    %541 = vperm.xlu0 %540, %v479
    %v542 = vpop.permute.xlu0 %541
    %545 = vset.pattern.permute.xlu0 0
    %546 = vperm.xlu0 %545, %v480
    %v547 = vpop.permute.xlu0 %546
    %550 = vset.pattern.permute.xlu0 0
    %551 = vperm.xlu0 %550, %v481
    %v552 = vpop.permute.xlu0 %551
    %555 = vset.pattern.permute.xlu0 0
    %556 = vperm.xlu0 %555, %v482
    %v557 = vpop.permute.xlu0 %556
    %560 = vset.pattern.permute.xlu0 0
    %561 = vperm.xlu0 %560, %v483
    %v562 = vpop.permute.xlu0 %561
    %v580 = vunpack.c.l.b16 %v444
    %v581 = vunpack.c.l.b16 %v445
    %v582 = vunpack.c.l.b16 %v446
    %v583 = vunpack.c.l.b16 %v447
    %v584 = vunpack.c.l.b16 %v448
    %v585 = vunpack.c.l.b16 %v449
    %v586 = vunpack.c.l.b16 %v450
    %v587 = vunpack.c.l.b16 %v451
    %v588 = vunpack.c.l.b16 %v452
    %v589 = vunpack.c.l.b16 %v453
    %v590 = vunpack.c.l.b16 %v454
    %v591 = vunpack.c.l.b16 %v455
    %v592 = vunpack.c.l.b16 %v456
    %v593 = vunpack.c.l.b16 %v457
    %v594 = vunpack.c.l.b16 %v458
    %v595 = vunpack.c.l.b16 %v459
    %v596 = vpack.c.b16 %v581, %v580
    %v597 = vpack.c.b16 %v583, %v582
    %v598 = vpack.c.b16 %v585, %v584
    %v599 = vpack.c.b16 %v587, %v586
    %v600 = vpack.c.b16 %v589, %v588
    %v601 = vpack.c.b16 %v591, %v590
    %v602 = vpack.c.b16 %v593, %v592
    %v603 = vpack.c.b16 %v595, %v594
    %vm604 = vcmask 523264
    %v606 = vsel %vm604, %v596, 0
    %v609 = vsel %vm604, %v597, 0
    %v612 = vsel %vm604, %v598, 0
    %v615 = vsel %vm604, %v599, 0
    %v618 = vsel %vm604, %v600, 0
    %v621 = vsel %vm604, %v601, 0
    %v624 = vsel %vm604, %v602, 0
    %v627 = vsel %vm604, %v603, 0
    %629 = vmatprep.subr.bf16.mxu0 %v461
    %630 = vmatpush1.bf16.msra.mxu0 %v460
    %631 = vmatprep.subr.bf16.mxu0 %v463
    %632 = vmatpush1.bf16.msra.mxu0 %v462
    %633 = vmatprep.subr.bf16.mxu0 %v465
    %634 = vmatpush1.bf16.msra.mxu0 %v464
    %635 = vmatprep.subr.bf16.mxu0 %v467
    %636 = vmatpush1.bf16.msra.mxu0 %v466
    %637 = vmatprep.subr.bf16.mxu0 0
    %638 = vmatpush1.bf16.msra.mxu0 0
    %639 = vmatprep.subr.bf16.mxu0 0
    %640 = vmatpush1.bf16.msra.mxu0 0
    %641 = vmatprep.subr.bf16.mxu0 0
    %642 = vmatpush1.bf16.msra.mxu0 0
    %643 = vmatprep.subr.bf16.mxu0 0
    %644 = vmatpush1.bf16.msra.mxu0 0
    %645 = vmatprep.subr.bf16.mxu0 0
    %646 = vmatpush1.bf16.msra.mxu0 0
    %647 = vmatprep.subr.bf16.mxu0 0
    %648 = vmatpush1.bf16.msra.mxu0 0
    %649 = vmatprep.subr.bf16.mxu0 0
    %650 = vmatpush1.bf16.msra.mxu0 0
    %651 = vmatprep.subr.bf16.mxu0 0
    %652 = vmatpush1.bf16.msra.mxu0 0
    %653 = vmatprep.subr.bf16.mxu0 0
    %654 = vmatpush1.bf16.msra.mxu0 0
    %655 = vmatprep.subr.bf16.mxu0 0
    %656 = vmatpush1.bf16.msra.mxu0 0
    %657 = vmatprep.subr.bf16.mxu0 0
    %658 = vmatpush1.bf16.msra.mxu0 0
    %659 = vmatprep.subr.bf16.mxu0 0
    %660 = vmatpush1.bf16.msra.mxu0 0
    %661 = vmatprep.mubr.bf16.mxu0 0
    %662 = vmatmul.mubr.bf16.gmra.mrb[0].mxu0 %v606
    %v663 = vpop.f32.mrb[0].mxu0
    %v664 = vadd.f32 %v487, %v663
    %v665 = vpop.f32.mrb[0].mxu0
    %v666 = vadd.f32 %v487, %v665
    %v667 = vpop.f32.mrb[0].mxu0
    %v668 = vadd.f32 %v492, %v667
    %v669 = vpop.f32.mrb[0].mxu0
    %v670 = vadd.f32 %v492, %v669
    %671 = vmatprep.mubr.bf16.mxu0 0
    %672 = vmatmul.mubr.bf16.gmra.mrb[0].mxu0 %v609
    %v673 = vpop.f32.mrb[0].mxu0
    %v674 = vadd.f32 %v497, %v673
    %v675 = vpop.f32.mrb[0].mxu0
    %v676 = vadd.f32 %v497, %v675
    %v677 = vpop.f32.mrb[0].mxu0
    %v678 = vadd.f32 %v502, %v677
    %v679 = vpop.f32.mrb[0].mxu0
    %v680 = vadd.f32 %v502, %v679
    %681 = vmatprep.mubr.bf16.mxu0 0
    %682 = vmatmul.mubr.bf16.gmra.mrb[0].mxu0 %v612
    %v683 = vpop.f32.mrb[0].mxu0
    %v684 = vadd.f32 %v507, %v683
    %v685 = vpop.f32.mrb[0].mxu0
    %v686 = vadd.f32 %v507, %v685
    %v687 = vpop.f32.mrb[0].mxu0
    %v688 = vadd.f32 %v512, %v687
    %v689 = vpop.f32.mrb[0].mxu0
    %v690 = vadd.f32 %v512, %v689
    %691 = vmatprep.mubr.bf16.mxu0 0
    %692 = vmatmul.mubr.bf16.gmra.mrb[0].mxu0 %v615
    %v693 = vpop.f32.mrb[0].mxu0
    %v694 = vadd.f32 %v517, %v693
    %v695 = vpop.f32.mrb[0].mxu0
    %v696 = vadd.f32 %v517, %v695
    %v697 = vpop.f32.mrb[0].mxu0
    %v698 = vadd.f32 %v522, %v697
    %v699 = vpop.f32.mrb[0].mxu0
    %v700 = vadd.f32 %v522, %v699
    %701 = vmatprep.mubr.bf16.mxu0 0
    %702 = vmatmul.mubr.bf16.gmra.mrb[0].mxu0 %v618
    %v703 = vpop.f32.mrb[0].mxu0
    %v704 = vadd.f32 %v527, %v703
    %v705 = vpop.f32.mrb[0].mxu0
    %v706 = vadd.f32 %v527, %v705
    %v707 = vpop.f32.mrb[0].mxu0
    %v708 = vadd.f32 %v532, %v707
    %v709 = vpop.f32.mrb[0].mxu0
    %v710 = vadd.f32 %v532, %v709
    %711 = vmatprep.mubr.bf16.mxu0 0
    %712 = vmatmul.mubr.bf16.gmra.mrb[0].mxu0 %v621
    %v713 = vpop.f32.mrb[0].mxu0
    %v714 = vadd.f32 %v537, %v713
    %v715 = vpop.f32.mrb[0].mxu0
    %v716 = vadd.f32 %v537, %v715
    %v717 = vpop.f32.mrb[0].mxu0
    %v718 = vadd.f32 %v542, %v717
    %v719 = vpop.f32.mrb[0].mxu0
    %v720 = vadd.f32 %v542, %v719
    %721 = vmatprep.mubr.bf16.mxu0 0
    %722 = vmatmul.mubr.bf16.gmra.mrb[0].mxu0 %v624
    %v723 = vpop.f32.mrb[0].mxu0
    %v724 = vadd.f32 %v547, %v723
    %v725 = vpop.f32.mrb[0].mxu0
    %v726 = vadd.f32 %v547, %v725
    %v727 = vpop.f32.mrb[0].mxu0
    %v728 = vadd.f32 %v552, %v727
    %v729 = vpop.f32.mrb[0].mxu0
    %v730 = vadd.f32 %v552, %v729
    %731 = vmatprep.mubr.bf16.mxu0 0
    %732 = vmatmul.mubr.bf16.gmra.mrb[0].mxu0 %v627
    %v733 = vpop.f32.mrb[0].mxu0
    %v734 = vadd.f32 %v557, %v733
    %v735 = vpop.f32.mrb[0].mxu0
    %v736 = vadd.f32 %v557, %v735
    %v737 = vpop.f32.mrb[0].mxu0
    %v738 = vadd.f32 %v562, %v737
    %v739 = vpop.f32.mrb[0].mxu0
    %v740 = vadd.f32 %v562, %v739
    %741 = vdwg.mxu0
    %v742 = vmax.f32 %v664, 0.0
    %v743 = vmax.f32 %v666, 0.0
    %v744 = vmax.f32 %v668, 0.0
    %v745 = vmax.f32 %v670, 0.0
    %v746 = vmax.f32 %v674, 0.0
    %v747 = vmax.f32 %v676, 0.0
    %v748 = vmax.f32 %v678, 0.0
    %v749 = vmax.f32 %v680, 0.0
    %v750 = vmax.f32 %v684, 0.0
    %v751 = vmax.f32 %v686, 0.0
    %v752 = vmax.f32 %v688, 0.0
    %v753 = vmax.f32 %v690, 0.0
    %v754 = vmax.f32 %v694, 0.0
    %v755 = vmax.f32 %v696, 0.0
    %v756 = vmax.f32 %v698, 0.0
    %v757 = vmax.f32 %v700, 0.0
    %v758 = vmax.f32 %v704, 0.0
    %v759 = vmax.f32 %v706, 0.0
    %v760 = vmax.f32 %v708, 0.0
    %v761 = vmax.f32 %v710, 0.0
    %v762 = vmax.f32 %v714, 0.0
    %v763 = vmax.f32 %v716, 0.0
    %v764 = vmax.f32 %v718, 0.0
    %v765 = vmax.f32 %v720, 0.0
    %v766 = vmax.f32 %v724, 0.0
    %v767 = vmax.f32 %v726, 0.0
    %v768 = vmax.f32 %v728, 0.0
    %v769 = vmax.f32 %v730, 0.0
    %v770 = vmax.f32 %v734, 0.0
    %v771 = vmax.f32 %v736, 0.0
    %v772 = vmax.f32 %v738, 0.0
    %v773 = vmax.f32 %v740, 0.0
    %v774 = vld [vmem:[%s5] sm:$0xf]
    %v775 = vld [vmem:[%s5 + $0x4] sm:$0xf]
    %v776 = vld [vmem:[%s5 + $0x8] sm:$0xf]
    %v777 = vld [vmem:[%s5 + $0xc] sm:$0xf]
    %v778 = vld [vmem:[%s5 + $0x10] sm:$0xf]
    %v779 = vld [vmem:[%s5 + $0x14] sm:$0xf]
    %v780 = vld [vmem:[%s5 + $0x18] sm:$0xf]
    %v781 = vld [vmem:[%s5 + $0x1c] sm:$0xf]
    %v782 = vpack.c.bf16 %v744, %v742
    %v783 = vpack.c.bf16 %v745, %v743
    %v784 = vpack.c.bf16 %v748, %v746
    %v785 = vpack.c.bf16 %v749, %v747
    %v786 = vpack.c.bf16 %v752, %v750
    %v787 = vpack.c.bf16 %v753, %v751
    %v788 = vpack.c.bf16 %v756, %v754
    %v789 = vpack.c.bf16 %v757, %v755
    %v790 = vpack.c.bf16 %v760, %v758
    %v791 = vpack.c.bf16 %v761, %v759
    %v792 = vpack.c.bf16 %v764, %v762
    %v793 = vpack.c.bf16 %v765, %v763
    %v794 = vpack.c.bf16 %v768, %v766
    %v795 = vpack.c.bf16 %v769, %v767
    %v796 = vpack.c.bf16 %v772, %v770
    %v797 = vpack.c.bf16 %v773, %v771
    %v798 = vld [vmem:[%s6] sm:$0xff]
    %v799 = vld [vmem:[%s6 + $0x8] sm:$0xff]
    %v800 = vld [vmem:[%s6 + $0x10] sm:$0xff]
    %v801 = vld [vmem:[%s6 + $0x18] sm:$0xff]
    %v802 = vld [vmem:[%s6 + $0x20] sm:$0xff]
    %v803 = vld [vmem:[%s6 + $0x28] sm:$0xff]
    %v804 = vld [vmem:[%s6 + $0x30] sm:$0xff]
    %v805 = vld [vmem:[%s6 + $0x38] sm:$0xff]
    %807 = vset.pattern.permute.xlu0 0
    %808 = vperm.xlu0 %807, %v798
    %v809 = vpop.permute.xlu0 %808
    %812 = vset.pattern.permute.xlu0 0
    %813 = vperm.xlu0 %812, %v799
    %v814 = vpop.permute.xlu0 %813
    %817 = vset.pattern.permute.xlu0 0
    %818 = vperm.xlu0 %817, %v800
    %v819 = vpop.permute.xlu0 %818
    %822 = vset.pattern.permute.xlu0 0
    %823 = vperm.xlu0 %822, %v801
    %v824 = vpop.permute.xlu0 %823
    %827 = vset.pattern.permute.xlu0 0
    %828 = vperm.xlu0 %827, %v802
    %v829 = vpop.permute.xlu0 %828
    %832 = vset.pattern.permute.xlu0 0
    %833 = vperm.xlu0 %832, %v803
    %v834 = vpop.permute.xlu0 %833
    %837 = vset.pattern.permute.xlu0 0
    %838 = vperm.xlu0 %837, %v804
    %v839 = vpop.permute.xlu0 %838
    %842 = vset.pattern.permute.xlu0 0
    %843 = vperm.xlu0 %842, %v805
    %v844 = vpop.permute.xlu0 %843
    %v854 = vunpack.c.l.b16 %v774
    %v855 = vunpack.c.l.b16 %v775
    %v856 = vunpack.c.l.b16 %v776
    %v857 = vunpack.c.l.b16 %v777
    %v858 = vunpack.c.l.b16 %v778
    %v859 = vunpack.c.l.b16 %v779
    %v860 = vunpack.c.l.b16 %v780
    %v861 = vunpack.c.l.b16 %v781
    %v862 = vpack.c.b16 %v855, %v854
    %v863 = vpack.c.b16 %v857, %v856
    %v864 = vpack.c.b16 %v859, %v858
    %v865 = vpack.c.b16 %v861, %v860
    %870 = vmatprep.subr.bf16.mxu0 %v783
    %871 = vmatpush1.bf16.msra.mxu0 %v782
    %872 = vmatprep.subr.bf16.mxu0 %v785
    %873 = vmatpush1.bf16.msra.mxu0 %v784
    %874 = vmatprep.subr.bf16.mxu0 %v787
    %875 = vmatpush1.bf16.msra.mxu0 %v786
    %876 = vmatprep.subr.bf16.mxu0 %v789
    %877 = vmatpush1.bf16.msra.mxu0 %v788
    %878 = vmatprep.subr.bf16.mxu0 %v791
    %879 = vmatpush1.bf16.msra.mxu0 %v790
    %880 = vmatprep.subr.bf16.mxu0 %v793
    %881 = vmatpush1.bf16.msra.mxu0 %v792
    %882 = vmatprep.subr.bf16.mxu0 %v795
    %883 = vmatpush1.bf16.msra.mxu0 %v794
    %884 = vmatprep.subr.bf16.mxu0 %v797
    %885 = vmatpush1.bf16.msra.mxu0 %v796
    %886 = vmatprep.subr.bf16.mxu0 0
    %887 = vmatpush1.bf16.msra.mxu0 0
    %888 = vmatprep.subr.bf16.mxu0 0
    %889 = vmatpush1.bf16.msra.mxu0 0
    %890 = vmatprep.subr.bf16.mxu0 0
    %891 = vmatpush1.bf16.msra.mxu0 0
    %892 = vmatprep.subr.bf16.mxu0 0
    %893 = vmatpush1.bf16.msra.mxu0 0
    %894 = vmatprep.subr.bf16.mxu0 0
    %895 = vmatpush1.bf16.msra.mxu0 0
    %896 = vmatprep.subr.bf16.mxu0 0
    %897 = vmatpush1.bf16.msra.mxu0 0
    %898 = vmatprep.subr.bf16.mxu0 0
    %899 = vmatpush1.bf16.msra.mxu0 0
    %900 = vmatprep.subr.bf16.mxu0 0
    %901 = vmatpush1.bf16.msra.mxu0 0
    %902 = vmatprep.mubr.bf16.mxu0 0
    %903 = vmatmul.mubr.bf16.gmra.mrb[0].mxu0 %v862
    %v904 = vpop.f32.mrb[0].mxu0
    %v905 = vadd.f32 %v809, %v904
    %v906 = vpop.f32.mrb[0].mxu0
    %v907 = vadd.f32 %v809, %v906
    %v908 = vpop.f32.mrb[0].mxu0
    %v909 = vadd.f32 %v814, %v908
    %v910 = vpop.f32.mrb[0].mxu0
    %v911 = vadd.f32 %v814, %v910
    %912 = vmatprep.mubr.bf16.mxu0 0
    %913 = vmatmul.mubr.bf16.gmra.mrb[0].mxu0 %v863
    %v914 = vpop.f32.mrb[0].mxu0
    %v915 = vadd.f32 %v819, %v914
    %v916 = vpop.f32.mrb[0].mxu0
    %v917 = vadd.f32 %v819, %v916
    %v918 = vpop.f32.mrb[0].mxu0
    %v919 = vadd.f32 %v824, %v918
    %v920 = vpop.f32.mrb[0].mxu0
    %v921 = vadd.f32 %v824, %v920
    %922 = vmatprep.mubr.bf16.mxu0 0
    %923 = vmatmul.mubr.bf16.gmra.mrb[0].mxu0 %v864
    %v924 = vpop.f32.mrb[0].mxu0
    %v925 = vadd.f32 %v829, %v924
    %v926 = vpop.f32.mrb[0].mxu0
    %v927 = vadd.f32 %v829, %v926
    %v928 = vpop.f32.mrb[0].mxu0
    %v929 = vadd.f32 %v834, %v928
    %v930 = vpop.f32.mrb[0].mxu0
    %v931 = vadd.f32 %v834, %v930
    %932 = vmatprep.mubr.bf16.mxu0 0
    %933 = vmatmul.mubr.bf16.gmra.mrb[0].mxu0 %v865
    %v934 = vpop.f32.mrb[0].mxu0
    %v935 = vadd.f32 %v839, %v934
    %v936 = vpop.f32.mrb[0].mxu0
    %v937 = vadd.f32 %v839, %v936
    %v938 = vpop.f32.mrb[0].mxu0
    %v939 = vadd.f32 %v844, %v938
    %v940 = vpop.f32.mrb[0].mxu0
    %v941 = vadd.f32 %v844, %v940
    %942 = vdwg.mxu0
    %v943 = vmax.f32 %v905, 0.0
    %v944 = vmax.f32 %v907, 0.0
    %v945 = vmax.f32 %v909, 0.0
    %v946 = vmax.f32 %v911, 0.0
    %v947 = vmax.f32 %v915, 0.0
    %v948 = vmax.f32 %v917, 0.0
    %v949 = vmax.f32 %v919, 0.0
    %v950 = vmax.f32 %v921, 0.0
    %v951 = vmax.f32 %v925, 0.0
    %v952 = vmax.f32 %v927, 0.0
    %v953 = vmax.f32 %v929, 0.0
    %v954 = vmax.f32 %v931, 0.0
    %v955 = vmax.f32 %v935, 0.0
    %v956 = vmax.f32 %v937, 0.0
    %v957 = vmax.f32 %v939, 0.0
    %v958 = vmax.f32 %v941, 0.0
    %v959 = vld [vmem:[%s7] sm:$0xf]
    %v960 = vpack.c.bf16 %v945, %v943
    %v961 = vpack.c.bf16 %v946, %v944
    %v962 = vpack.c.bf16 %v949, %v947
    %v963 = vpack.c.bf16 %v950, %v948
    %v964 = vpack.c.bf16 %v953, %v951
    %v965 = vpack.c.bf16 %v954, %v952
    %v966 = vpack.c.bf16 %v957, %v955
    %v967 = vpack.c.bf16 %v958, %v956
    %v968 = vld [vmem:[%s8] sm:$0xff]
    %970 = vset.pattern.permute.xlu0 0
    %971 = vperm.xlu0 %970, %v968
    %v972 = vpop.permute.xlu0 %971
    %v975 = vsel %vm604, %v959, 0
    %977 = vmatprep.subr.bf16.mxu0 %v961
    %978 = vmatpush1.bf16.msra.mxu0 %v960
    %979 = vmatprep.subr.bf16.mxu0 %v963
    %980 = vmatpush1.bf16.msra.mxu0 %v962
    %981 = vmatprep.subr.bf16.mxu0 %v965
    %982 = vmatpush1.bf16.msra.mxu0 %v964
    %983 = vmatprep.subr.bf16.mxu0 %v967
    %984 = vmatpush1.bf16.msra.mxu0 %v966
    %985 = vmatprep.subr.bf16.mxu0 0
    %986 = vmatpush1.bf16.msra.mxu0 0
    %987 = vmatprep.subr.bf16.mxu0 0
    %988 = vmatpush1.bf16.msra.mxu0 0
    %989 = vmatprep.subr.bf16.mxu0 0
    %990 = vmatpush1.bf16.msra.mxu0 0
    %991 = vmatprep.subr.bf16.mxu0 0
    %992 = vmatpush1.bf16.msra.mxu0 0
    %993 = vmatprep.subr.bf16.mxu0 0
    %994 = vmatpush1.bf16.msra.mxu0 0
    %995 = vmatprep.subr.bf16.mxu0 0
    %996 = vmatpush1.bf16.msra.mxu0 0
    %997 = vmatprep.subr.bf16.mxu0 0
    %998 = vmatpush1.bf16.msra.mxu0 0
    %999 = vmatprep.subr.bf16.mxu0 0
    %1000 = vmatpush1.bf16.msra.mxu0 0
    %1001 = vmatprep.subr.bf16.mxu0 0
    %1002 = vmatpush1.bf16.msra.mxu0 0
    %1003 = vmatprep.subr.bf16.mxu0 0
    %1004 = vmatpush1.bf16.msra.mxu0 0
    %1005 = vmatprep.subr.bf16.mxu0 0
    %1006 = vmatpush1.bf16.msra.mxu0 0
    %1007 = vmatprep.subr.bf16.mxu0 0
    %1008 = vmatpush1.bf16.msra.mxu0 0
    %1009 = vmatprep.mubr.bf16.mxu0 0
    %1010 = vmatmul.mubr.bf16.gmra.mrb[0].mxu0 %v975
    %v1011 = vpop.f32.mrb[0].mxu0
    %v1012 = vadd.f32 %v972, %v1011
    %v1013 = vpop.f32.mrb[0].mxu0
    %v1014 = vadd.f32 %v972, %v1013
    %v1015 = vpop.f32.mrb[0].mxu0
    %v1016 = vpop.f32.mrb[0].mxu0
    %1017 = vdwg.mxu0
    %v1018 = vxor.u32 %v1012, 2147483648
    %v1019 = vxor.u32 %v1014, 2147483648
    %v1020 = vmul.f32 %v1018, 1.442695
    %v1021 = vpow.pop %v1020
    %v1022 = vmul.f32 %v1019, 1.442695
    %v1023 = vpow.pop %v1022
    %v1024 = vadd.f32 %v1021, 1.0
    %v1025 = vadd.f32 %v1023, 1.0
    %v1026 = vrcp.pop %v1024
    %v1027 = vmul.f32 1.0, %v1026
    %v1028 = vrcp.pop %v1025
    %v1029 = vmul.f32 1.0, %v1028
    %1030 = vst [vmem:[#allocation2] sm:$0xff] %v1027
    %1031 = vst [vmem:[#allocation2 + $0x8] sm:$0xff] %v1029
    // Predicated region
    $region38: #{tpu_custom_call.1} parent=1 // pred_check
      _
    $region39: #{tpu_custom_call.1} parent=1 // pred_check_branch
      %1033 = sbr.rel (0) target = $region41
    $region40: #{tpu_custom_call.1} parent=1 // pred_region
      %s1035 = ssub.s32 256, 256
      %1036 = vsyncadd [#allocation3], %s1035
      %s1038 = sshll.u32 [#allocation2], 4
      %s1039 = int_to_ptr.vmem [resolvable:$true] %s1038
      %1041 = dma.vmem_to_hbm [thread:$0]  %s1039, 256, %s9, [#allocation3]
    $region41: #{tpu_custom_call.1} parent=1 // pred_fallthru
      _
    // Predicated region
    $region42: #{tpu_custom_call.1} parent=1 // pred_check
      _
    $region43: #{tpu_custom_call.1} parent=1 // pred_check_branch
      %1043 = sbr.rel (0) target = $region45
    $region44: #{tpu_custom_call.1} parent=1 // pred_region
      %1044 = dma.done [#allocation3], 256
    $region45: #{tpu_custom_call.1} parent=1 // pred_fallthru
      _
    %1045 = vsyncpa [#allocation3], 1

</llo_original>
